<compile_context>
chip_gen: v5e
topology: v5e:2x2
jax: 0.10.0
libtpu: 0.0.40
codegen_flags: <defaults>
</compile_context>

<pallas_src>
import functools
import math

import jax
import jax.numpy as jnp
from jax.experimental import pallas as pl
from jax.experimental.pallas import tpu as pltpu


def _round_up(n, m):
    return ((n + m - 1) // m) * m


def _embed_kernel(x_ref, w_ref, o_ref):
    # Linear (no bias): y = x @ W, f32 accumulation on the MXU.
    o_ref[...] = jnp.dot(
        x_ref[...], w_ref[...], preferred_element_type=jnp.float32
    ).astype(o_ref.dtype)


def _embed_dropout_kernel(x_ref, w_ref, bits_ref, o_ref, *, drop_thr, inv_keep):
    y = jnp.dot(x_ref[...], w_ref[...], preferred_element_type=jnp.float32)
    # Inverted dropout: keep iff bits >= thr (thr = p * 2^32), fold 1/(1-p) into the
    # select.  One integer compare + one mul + one select per element.
    keep = bits_ref[...] >= jnp.uint32(drop_thr)
    o_ref[...] = jnp.where(keep, y * inv_keep, 0.0).astype(o_ref.dtype)


def class_embedding_forward(
    x,
    weight_t,
    *,
    dropout_p=0.0,
    training=False,
    rng_key=None,
    compute_dtype=None,
    tile_m=512,
):
    """x: [B, S, ntoken]; weight_t: [ntoken, emb_dim] (= torch Linear weight.T)."""
    B, S, ntoken = x.shape
    k_w, emb_dim = weight_t.shape
    assert k_w == ntoken
    M = B * S
    out_dtype = x.dtype

    # Pad K and N to lane-dense multiples of 128 (unmasked vst, better MXU fill).
    K_pad = _round_up(ntoken, 128)
    N_pad = _round_up(emb_dim, 128)

    # Tile M against a conservative VMEM budget so the same code is safe on
    # v7x (32 MiB scoped / 64 MiB physical) and v5e/v6e (128 MiB).
    bytes_per_row = 4 * (K_pad + 2 * N_pad)          # x tile + out tile + dropout bits
    budget = 24 * 1024 * 1024                        # leave headroom + weight + dbl-buf
    tile_m = min(tile_m, max(8, (budget // (2 * bytes_per_row)) // 8 * 8))
    tile_m = min(tile_m, _round_up(M, 8))            # don't over-tile tiny inputs
    M_pad = _round_up(M, tile_m)

    x2d = x.reshape(M, ntoken)
    x2d = jnp.pad(x2d, ((0, M_pad - M), (0, K_pad - ntoken)))
    w_p = jnp.pad(weight_t, ((0, K_pad - ntoken), (0, N_pad - emb_dim)))
    if compute_dtype is not None:
        x2d = x2d.astype(compute_dtype)
        w_p = w_p.astype(compute_dtype)

    grid = (M_pad // tile_m,)
    x_spec = pl.BlockSpec((tile_m, K_pad), lambda i: (i, 0))
    w_spec = pl.BlockSpec((K_pad, N_pad), lambda i: (0, 0))   # resident across the grid
    o_spec = pl.BlockSpec((tile_m, N_pad), lambda i: (i, 0))
    out_shape = jax.ShapeDtypeStruct((M_pad, N_pad), out_dtype)

    cost = pl.CostEstimate(
        flops=2 * M_pad * K_pad * N_pad,
        transcendentals=0,
        bytes_accessed=(
            x2d.size * x2d.dtype.itemsize
            + w_p.size * w_p.dtype.itemsize
            + M_pad * N_pad * jnp.dtype(out_dtype).itemsize
        ),
    )
    cparams = pltpu.CompilerParams(dimension_semantics=("parallel",))

    apply_dropout = bool(training) and 0.0 < float(dropout_p) < 1.0
    if apply_dropout:
        if rng_key is None:
            rng_key = jax.random.PRNGKey(0)
        bits = jax.random.bits(rng_key, (M_pad, N_pad), dtype=jnp.uint32)
        drop_thr = min(int(round(float(dropout_p) * (2 ** 32))), 2 ** 32 - 1)
        kernel = functools.partial(
            _embed_dropout_kernel,
            drop_thr=drop_thr,
            inv_keep=1.0 / (1.0 - float(dropout_p)),
        )
        out2d = pl.pallas_call(
            kernel,
            out_shape=out_shape,
            grid=grid,
            in_specs=[x_spec, w_spec, pl.BlockSpec((tile_m, N_pad), lambda i: (i, 0))],
            out_specs=o_spec,
            compiler_params=cparams,
            cost_estimate=cost,
        )(x2d, w_p, bits)
    else:
        out2d = pl.pallas_call(
            _embed_kernel,
            out_shape=out_shape,
            grid=grid,
            in_specs=[x_spec, w_spec],
            out_specs=o_spec,
            compiler_params=cparams,
            cost_estimate=cost,
        )(x2d, w_p)

    if training and float(dropout_p) >= 1.0:
        # torch.nn.Dropout(p=1) zeroes everything in train mode.
        out2d = jnp.zeros_like(out2d)

    return out2d[:M, :emb_dim].reshape(B, S, emb_dim)


if __name__ == "__main__":
    # Module config (small, consistent with ClassEmbedding(ntoken, emb_dim, dropout)).
    ntoken, emb_dim, dropout_p = 32, 64, 0.5
    B, S = 2, 8
    M = B * S

    key = jax.random.PRNGKey(0)
    kx, kw, kd = jax.random.split(key, 3)

    # Input: soft class scores over ntoken classes.
    x = jax.random.normal(kx, (B, S, ntoken), dtype=jnp.float32)

    # Torch Linear weight is (emb_dim, ntoken); we store its transpose.
    bound = 1.0 / math.sqrt(ntoken)
    weight = jax.random.uniform(kw, (emb_dim, ntoken), jnp.float32, -bound, bound)
    weight_t = weight.T

    # 1) Eval-mode forward (dropout = identity, matching module.eval()).
    out = class_embedding_forward(x, weight_t, dropout_p=dropout_p, training=False)
    out = jax.block_until_ready(out)
    ref = (x.reshape(M, ntoken) @ weight_t).reshape(B, S, emb_dim)
    assert out.shape == (B, S, emb_dim)
    assert jnp.allclose(out, ref, atol=1e-5, rtol=1e-5)

    # 2) Training-mode forward (exercises the fused dropout epilogue).
    out_tr = class_embedding_forward(
        x, weight_t, dropout_p=dropout_p, training=True, rng_key=kd
    )
    out_tr = jax.block_until_ready(out_tr)
    assert out_tr.shape == (B, S, emb_dim)
    scaled_ref = ref / (1.0 - dropout_p)
    kept = out_tr != 0.0
    n_zero = int(jnp.sum(~kept))
    assert 0 < n_zero < out_tr.size                      # some dropped, some kept
    assert jnp.allclose(jnp.where(kept, out_tr, scaled_ref), scaled_ref,
                        atol=1e-4, rtol=1e-4)            # kept values = scaled linear out

    # 3) bf16-operand path (MXU-friendly), f32 accumulation, eval mode.
    out_bf = class_embedding_forward(
        x, weight_t, training=False, compute_dtype=jnp.bfloat16
    )
    out_bf = jax.block_until_ready(out_bf)
    ref_bf = jnp.dot(
        x.reshape(M, ntoken).astype(jnp.bfloat16),
        weight_t.astype(jnp.bfloat16),
        preferred_element_type=jnp.float32,
    ).reshape(B, S, emb_dim)
    assert jnp.allclose(out_bf, ref_bf, atol=1e-2, rtol=1e-2)

    print("KERNEL_OK")
</pallas_src>

<mosaic_0001>
module attributes {stable_mosaic.version = 11 : i64} {
  func.func @_embed_kernel(%arg0: i32, %arg1: memref<16x128xf32, #tpu.memory_space<vmem>>, %arg2: memref<128x128xf32, #tpu.memory_space<vmem>>, %arg3: memref<16x128xf32, #tpu.memory_space<vmem>>) attributes {dimension_semantics = [#tpu.dimension_semantics<parallel>], iteration_bounds = array<i64: 1>, scalar_prefetch = 0 : i64, scratch_operands = 0 : i64, tpu.core_type = #tpu.core_type<tc>, window_params = [{transform_indices = @transform_0, window_bounds = array<i64: 16, 128>}, {pipeline_mode = #tpu.pipeline_mode<synchronous>, transform_indices = @transform_1, window_bounds = array<i64: 128, 128>}, {transform_indices = @transform_2, window_bounds = array<i64: 16, 128>}]} {
    %c0 = arith.constant 0 : index
    %c0_0 = arith.constant 0 : index
    %0 = vector.load %arg1[%c0, %c0_0] : memref<16x128xf32, #tpu.memory_space<vmem>>, vector<16x128xf32>
    %c0_1 = arith.constant 0 : index
    %c0_2 = arith.constant 0 : index
    %1 = vector.load %arg2[%c0_1, %c0_2] : memref<128x128xf32, #tpu.memory_space<vmem>>, vector<128x128xf32>
    %cst = arith.constant dense<0.000000e+00> : vector<16x128xf32>
    %2 = tpu.matmul %0, %1, %cst {dimension_numbers = #tpu.dot_dimension_numbers<[1], [0], [0], [1], [0, 0, 1, 1], [], []>} : vector<16x128xf32>, vector<128x128xf32>, vector<16x128xf32> -> vector<16x128xf32>
    %c0_3 = arith.constant 0 : index
    %c0_4 = arith.constant 0 : index
    %3 = vector.load %arg3[%c0_3, %c0_4] : memref<16x128xf32, #tpu.memory_space<vmem>>, vector<16x128xf32>
    tpu.vector_store %arg3[%c0_3, %c0_4], %2 {strides = array<i32>} : memref<16x128xf32, #tpu.memory_space<vmem>>, vector<16x128xf32>,
    return
  }
  func.func @transform_0(%arg0: i32) -> (i32, i32) {
    %c0_i32 = arith.constant 0 : i32
    %c0_i32_0 = arith.constant 0 : i32
    return %arg0, %c0_i32 : i32, i32
  }
  func.func @transform_1(%arg0: i32) -> (i32, i32) {
    %c0_i32 = arith.constant 0 : i32
    %c0_i32_0 = arith.constant 0 : i32
    %c0_i32_1 = arith.constant 0 : i32
    return %c0_i32, %c0_i32_0 : i32, i32
  }
  func.func @transform_2(%arg0: i32) -> (i32, i32) {
    %c0_i32 = arith.constant 0 : i32
    %c0_i32_0 = arith.constant 0 : i32
    return %arg0, %c0_i32 : i32, i32
  }
}

</mosaic_0001>

<llo_original>
// kernel: tpu_custom_call.1
$region0: #{tpu_custom_call.1}
  #allocation0 [shape = 'u32[]', space=smem, size = 0x4, offset = 0x4, fixed_abs, tag = 'smem constant byte address 0x4 - core index']
  #allocation1 [shape = 'u32[72,128]{1,0:T(1,128)}', space=vmem, size = 0x9000, scoped, tag = 'internal scratch']
  %s0 = inlined_call_operand.hbm [shape: f32[16,128], index: 0, kind: input, shape index: {}]
  %s1 = inlined_call_operand.hbm [shape: f32[128,128], index: 1, kind: input, shape index: {}]
  %s2 = inlined_call_operand.hbm [shape: f32[16,128], index: 2, kind: output, shape index: {}]
  %s3 = sld [smem:[#allocation0]]
  $region26: #{tpu_custom_call.1} parent=0
    _
  %s5 = ssub.s32 1, %s3
  %s6 = scalar_select 0, %s5, %s3
  $region1: #{tpu_custom_call.1} parent=0
    #allocation2 [shape = 'u8[8192]{0}', space=vmem, size = 0x2000, scoped, tag = 'input window, operand 0, single buffered']
    #allocation3 [shape = 's32[1]{0}', space=sflag, size = 0x4, scoped, tag = 'scoped memory for tpu_custom_call.1']
    #allocation4 [shape = 's32[1]{0}', space=sflag, size = 0x4, scoped, tag = 'scoped memory for tpu_custom_call.1']
    #allocation5 [shape = 'u8[65536]{0}', space=vmem, size = 0x10000, scoped, tag = 'input window, operand 1, single buffered']
    #allocation6 [shape = 's32[1]{0}', space=sflag, size = 0x4, scoped, tag = 'scoped memory for tpu_custom_call.1']
    #allocation7 [shape = 'u8[8192]{0}', space=vmem, size = 0x2000, scoped, tag = 'output window, operand 0, single buffered']
    %7 = vsyncpa [#allocation3], 0
    %8 = vsyncpa [#allocation6], 0
    %9 = vsyncpa [#allocation4], 0
    // Predicated region
    $region2: #{tpu_custom_call.1} parent=1 // pred_check
      _
    $region3: #{tpu_custom_call.1} parent=1 // pred_check_branch
      %11 = sbr.rel (0) target = $region5
    $region4: #{tpu_custom_call.1} parent=1 // pred_region
      %13 = vsyncadd [#allocation3], 0
      %s14 = sshll.u32 %s0, 4
      %s15 = int_to_ptr.hbm [resolvable:$true] %s14
      %s16 = sshll.u32 [#allocation2], 4
      %s17 = int_to_ptr.vmem [resolvable:$true] %s16
      %22 = dma.hbm_to_vmem [thread:$0]  %s15, 256, %s17, [#allocation3], 128, 128, 8
    $region5: #{tpu_custom_call.1} parent=1 // pred_fallthru
      _
    // Predicated region
    $region6: #{tpu_custom_call.1} parent=1 // pred_check
      _
    $region7: #{tpu_custom_call.1} parent=1 // pred_check_branch
      %24 = sbr.rel (0) target = $region9
    $region8: #{tpu_custom_call.1} parent=1 // pred_region
      %26 = vsyncadd [#allocation6], 0
      %s27 = sshll.u32 %s1, 4
      %s28 = int_to_ptr.hbm [resolvable:$true] %s27
      %s29 = sshll.u32 [#allocation5], 4
      %s30 = int_to_ptr.vmem [resolvable:$true] %s29
      %35 = dma.hbm_to_vmem [thread:$0]  %s28, 2048, %s30, [#allocation6], 128, 128, 8
    $region9: #{tpu_custom_call.1} parent=1 // pred_fallthru
      _
    // Predicated region
    $region10: #{tpu_custom_call.1} parent=1 // pred_check
      _
    $region11: #{tpu_custom_call.1} parent=1 // pred_check_branch
      %37 = sbr.rel (0) target = $region13
    $region12: #{tpu_custom_call.1} parent=1 // pred_region
      %39 = dma.done [#allocation3], 256
    $region13: #{tpu_custom_call.1} parent=1 // pred_fallthru
      _
    // Predicated region
    $region14: #{tpu_custom_call.1} parent=1 // pred_check
      _
    $region15: #{tpu_custom_call.1} parent=1 // pred_check_branch
      %41 = sbr.rel (0) target = $region17
    $region16: #{tpu_custom_call.1} parent=1 // pred_region
      %43 = dma.done [#allocation6], 2048
    $region17: #{tpu_custom_call.1} parent=1 // pred_fallthru
      _
    %v44 = vld [vmem:[#allocation2] sm:$0xff]
    %v45 = vld [vmem:[#allocation2 + $0x8] sm:$0xff]
    %v46 = vld [vmem:[#allocation5] sm:$0xff]
    %v47 = vld [vmem:[#allocation5 + $0x8] sm:$0xff]
    %v48 = vld [vmem:[#allocation5 + $0x10] sm:$0xff]
    %v49 = vld [vmem:[#allocation5 + $0x18] sm:$0xff]
    %v50 = vld [vmem:[#allocation5 + $0x20] sm:$0xff]
    %v51 = vld [vmem:[#allocation5 + $0x28] sm:$0xff]
    %v52 = vld [vmem:[#allocation5 + $0x30] sm:$0xff]
    %v53 = vld [vmem:[#allocation5 + $0x38] sm:$0xff]
    %v54 = vld [vmem:[#allocation5 + $0x40] sm:$0xff]
    %v55 = vld [vmem:[#allocation5 + $0x48] sm:$0xff]
    %v56 = vld [vmem:[#allocation5 + $0x50] sm:$0xff]
    %v57 = vld [vmem:[#allocation5 + $0x58] sm:$0xff]
    %v58 = vld [vmem:[#allocation5 + $0x60] sm:$0xff]
    %v59 = vld [vmem:[#allocation5 + $0x68] sm:$0xff]
    %v60 = vld [vmem:[#allocation5 + $0x70] sm:$0xff]
    %v61 = vld [vmem:[#allocation5 + $0x78] sm:$0xff]
    %62 = vmatpush.msra.mxu0 %v61
    %63 = vmatpush.msra.mxu0 %v60
    %64 = vmatpush.msra.mxu0 %v59
    %65 = vmatpush.msra.mxu0 %v58
    %66 = vmatpush.msra.mxu0 %v57
    %67 = vmatpush.msra.mxu0 %v56
    %68 = vmatpush.msra.mxu0 %v55
    %69 = vmatpush.msra.mxu0 %v54
    %70 = vmatpush.msra.mxu0 %v53
    %71 = vmatpush.msra.mxu0 %v52
    %72 = vmatpush.msra.mxu0 %v51
    %73 = vmatpush.msra.mxu0 %v50
    %74 = vmatpush.msra.mxu0 %v49
    %75 = vmatpush.msra.mxu0 %v48
    %76 = vmatpush.msra.mxu0 %v47
    %77 = vmatpush.msra.mxu0 %v46
    %78 = vmatmul.f32.gmra.mxu0 %v44
    %v79 = vpop.f32.mrf.mxu0
    %v80 = vadd.f32 0.0, %v79
    %81 = vmatmul.f32.gmra.mxu0 %v45
    %v82 = vpop.f32.mrf.mxu0
    %v83 = vadd.f32 0.0, %v82
    %84 = vdwg.mxu0
    %85 = vst [vmem:[#allocation7] sm:$0xff] %v80
    %86 = vst [vmem:[#allocation7 + $0x8] sm:$0xff] %v83
    // Predicated region
    $region18: #{tpu_custom_call.1} parent=1 // pred_check
      _
    $region19: #{tpu_custom_call.1} parent=1 // pred_check_branch
      %88 = sbr.rel (0) target = $region21
    $region20: #{tpu_custom_call.1} parent=1 // pred_region
      %90 = vsyncadd [#allocation4], 0
      %s91 = sshll.u32 [#allocation7], 4
      %s92 = int_to_ptr.vmem [resolvable:$true] %s91
      %s93 = sshll.u32 %s2, 4
      %s94 = int_to_ptr.hbm [resolvable:$true] %s93
      %99 = dma.vmem_to_hbm [thread:$0]  %s92, 256, %s94, [#allocation4], 128, 128, 8
    $region21: #{tpu_custom_call.1} parent=1 // pred_fallthru
      _
    // Predicated region
    $region22: #{tpu_custom_call.1} parent=1 // pred_check
      _
    $region23: #{tpu_custom_call.1} parent=1 // pred_check_branch
      %101 = sbr.rel (0) target = $region25
    $region24: #{tpu_custom_call.1} parent=1 // pred_region
      %103 = dma.done [#allocation4], 256
    $region25: #{tpu_custom_call.1} parent=1 // pred_fallthru
      _
    %104 = vsyncpa [#allocation3], 1
    %105 = vsyncpa [#allocation6], 1
    %106 = vsyncpa [#allocation4], 1

</llo_original>
